<compile_context>
chip_gen: v7x
topology: tpu7x:2x2x1
jax: 0.10.0
libtpu: 0.0.40
codegen_flags: <defaults>
</compile_context>

<pallas_src>
import functools

import numpy as np

import jax
import jax.numpy as jnp
from jax.experimental import pallas as pl
from jax.experimental.pallas import tpu as pltpu


def _round_up(v, m):
    return (v + m - 1) // m * m


# ---------------------------------------------------------------------------
# Precomputed constant maps (numpy, trace time, tiny):
#   rows 0..5 : bilinear tap weights ax,bx,cx,ay,by,cy  (0.75/0.25/1.0/0.0)
#   rows 6..13: conv zero-padding masks for the 8 non-center 3x3 taps
# Applying   a*v + b*roll(v,+1) + c*roll(v,-1)   per axis to the nearest-
# neighbour 2x upsampled signal reproduces PyTorch's bilinear (half-pixel,
# align_corners=False) exactly, including the edge clamping.
# ---------------------------------------------------------------------------
def _bilinear_tap_weights_1d(n_out):
    b = np.zeros(n_out, np.float32)
    c = np.zeros(n_out, np.float32)
    b[2::2] = 0.25                 # even o >= 2 : + 0.25 * value at o-1
    c[1::2] = 0.25                 # odd  o      : + 0.25 * value at o+1
    c[n_out - 1] = 0.0             # last (odd) output clamps to the edge
    a = 1.0 - b - c                # 0.75 interior, 1.0 at the two edges
    return a, b, c


def _build_maps(H, W):
    HW = H * W
    ax, bx, cx = _bilinear_tap_weights_1d(W)
    ay, by, cy = _bilinear_tap_weights_1d(H)
    rows = [np.tile(ax, H), np.tile(bx, H), np.tile(cx, H),
            np.repeat(ay, W), np.repeat(by, W), np.repeat(cy, W)]
    X = np.tile(np.arange(W), H)
    Y = np.repeat(np.arange(H), W)
    for dy in (-1, 0, 1):
        for dx in (-1, 0, 1):
            if dy == 0 and dx == 0:
                continue
            valid = ((X + dx >= 0) & (X + dx < W) &
                     (Y + dy >= 0) & (Y + dy < H))
            rows.append(valid.astype(np.float32))
    maps = np.stack(rows, axis=0)                         # (14, HW)
    pad = (-maps.shape[0]) % 8
    if pad:
        maps = np.concatenate([maps, np.zeros((pad, HW), np.float32)], axis=0)
    return maps.astype(np.float32)                        # (16, HW)


# ---------------------------------------------------------------------------
# Fused kernel: bilinear refinement + concat + 3x3 conv (im2col matmul)
#               + bias + leaky_relu(0.1).  One grid step == one batch item.
# ---------------------------------------------------------------------------
def _up_light_kernel(xnn_ref, skp_ref, maps_ref, w_ref, b_ref, o_ref, pat_ref,
                     *, W, HW, Cin_p):
    # xnn_ref : (1, Cxp, H*W)   nearest-neighbour 2x replicated x (f32)
    # skp_ref : (1, Csp, H*W)   skip input at output resolution (f32)
    # maps_ref: (16, H*W)       precomputed bilinear weights + conv masks (f32)
    # w_ref   : (Cout, 9*Cin_p) conv weights, tap-major / channel-minor (bf16)
    # b_ref   : (Cout, 1)       bias (f32)
    # o_ref   : (1, Cout, H*W)  output (lane-dense)
    # pat_ref : (9*Cin_p, H*W)  bf16 im2col scratch

    nn = xnn_ref[0]                                        # (Cxp, HW)

    # 1) bilinear 2x refinement of the nearest-upsampled x: 4 XLU rolls +
    #    precomputed per-pixel weights (boundary weights are 0 -> wrap is safe).
    left = pltpu.roll(nn, shift=1, axis=1)                 # value at X-1
    right = pltpu.roll(nn, shift=HW - 1, axis=1)           # value at X+1
    xw = maps_ref[0] * nn + maps_ref[1] * left + maps_ref[2] * right
    up = pltpu.roll(xw, shift=W, axis=1)                   # value at Y-1
    down = pltpu.roll(xw, shift=HW - W, axis=1)            # value at Y+1
    x_up = maps_ref[3] * xw + maps_ref[4] * up + maps_ref[5] * down

    # 2) channel concat (upsampled x first, then skip) -> (Cin_p, H*W).
    #    Both pieces are 8-sublane aligned, so no relayout.
    cat = jnp.concatenate([x_up, skp_ref[0]], axis=0)

    # 3) im2col for the 3x3 / pad=1 conv: 8 lane-rolls + precomputed border
    #    masks, written straight into the bf16 scratch (sublane-aligned since
    #    Cin_p is a multiple of 8/16).
    t = 0
    m = 6
    for dy in (-1, 0, 1):
        for dx in (-1, 0, 1):
            s = dy * W + dx
            if s == 0:
                tap = cat                                   # center: no roll/mask
            else:
                tap = pltpu.roll(cat, shift=(-s) % HW, axis=1) * maps_ref[m]
                m += 1
            pat_ref[t * Cin_p:(t + 1) * Cin_p, :] = tap.astype(jnp.bfloat16)
            t += 1

    # 4) single K = 9*Cin_p bf16 matmul with f32 accumulation, then epilogue.
    acc = jnp.dot(w_ref[...], pat_ref[...], preferred_element_type=jnp.float32)
    acc = acc + b_ref[...]
    o_ref[0] = jnp.maximum(acc, 0.1 * acc).astype(o_ref.dtype)   # leaky_relu(0.1)


# ---------------------------------------------------------------------------
# up_light.forward (norm=False branch)
# ---------------------------------------------------------------------------
@jax.jit
def up_light_forward(x_nchw, skp_nchw, w_oihw, b):
    N, Cx, h, w = x_nchw.shape
    _, Cs, H, W = skp_nchw.shape
    assert (H, W) == (2 * h, 2 * w)
    Cout = w_oihw.shape[0]
    HW = H * W
    # NOTE: best store performance when H*W is a multiple of 128 (lane-dense
    # output); correctness does not depend on it.

    # Channel counts rounded up to the 8-sublane tile (no-op when already %8).
    Cxp = _round_up(Cx, 8)
    Csp = _round_up(Cs, 8)
    Cin_p = Cxp + Csp

    # x branch: pad channels, nearest-neighbour 2x replicate (cheap XLA copy),
    # flatten spatial onto lanes.
    x_p = jnp.pad(x_nchw, ((0, 0), (0, Cxp - Cx), (0, 0), (0, 0)))
    x_nn = jnp.repeat(jnp.repeat(x_p, 2, axis=2), 2, axis=3).reshape(N, Cxp, HW)
    s_flat = jnp.pad(skp_nchw.reshape(N, Cs, HW),
                     ((0, 0), (0, Csp - Cs), (0, 0)))

    maps = jnp.asarray(_build_maps(H, W))                  # (16, HW) f32 constant

    # Conv weights (Cout, Cin, 3, 3) -> (Cout, 9*Cin_p) bf16, tap-major columns,
    # zero columns for the padded channels.
    w_t = jnp.transpose(w_oihw, (0, 2, 3, 1))              # (Cout, 3, 3, Cin)
    w_x = jnp.pad(w_t[..., :Cx], ((0, 0),) * 3 + ((0, Cxp - Cx),))
    w_s = jnp.pad(w_t[..., Cx:], ((0, 0),) * 3 + ((0, Csp - Cs),))
    w_r = (jnp.concatenate([w_x, w_s], axis=-1)
           .reshape(Cout, 9 * Cin_p).astype(jnp.bfloat16))
    b_r = b.reshape(Cout, 1)

    kernel = functools.partial(_up_light_kernel, W=W, HW=HW, Cin_p=Cin_p)
    out_flat = pl.pallas_call(
        kernel,
        out_shape=jax.ShapeDtypeStruct((N, Cout, HW), x_nchw.dtype),
        grid_spec=pltpu.PrefetchScalarGridSpec(
            num_scalar_prefetch=0,
            grid=(N,),
            in_specs=[
                pl.BlockSpec((1, Cxp, HW), lambda n: (n, 0, 0)),
                pl.BlockSpec((1, Csp, HW), lambda n: (n, 0, 0)),
                pl.BlockSpec((16, HW), lambda n: (0, 0)),
                pl.BlockSpec((Cout, 9 * Cin_p), lambda n: (0, 0)),
                pl.BlockSpec((Cout, 1), lambda n: (0, 0)),
            ],
            out_specs=pl.BlockSpec((1, Cout, HW), lambda n: (n, 0, 0)),
            scratch_shapes=[pltpu.VMEM((9 * Cin_p, HW), jnp.bfloat16)],
        ),
        compiler_params=pltpu.CompilerParams(
            dimension_semantics=("parallel",)),  # batch items independent
    )(x_nn, s_flat, maps, w_r, b_r)

    return out_flat.reshape(N, Cout, H, W)


# ---------------------------------------------------------------------------
# Pure-JAX reference (independent path: gather-based upsample + XLA conv).
# ---------------------------------------------------------------------------
def _upsample2x_bilinear_ref(x):                          # NCHW
    _, _, h, w = x.shape

    def idx_weights(n_in, n_out):
        dst = jnp.arange(n_out, dtype=jnp.float32)
        src = jnp.maximum(dst * 0.5 - 0.25, 0.0)
        i0 = jnp.floor(src).astype(jnp.int32)
        i1 = jnp.minimum(i0 + 1, n_in - 1)
        l1 = src - i0.astype(jnp.float32)
        return i0, i1, 1.0 - l1, l1

    i0, i1, l0, l1 = idx_weights(h, 2 * h)
    xh = (jnp.take(x, i0, axis=2) * l0[None, None, :, None]
          + jnp.take(x, i1, axis=2) * l1[None, None, :, None])
    j0, j1, m0, m1 = idx_weights(w, 2 * w)
    return (jnp.take(xh, j0, axis=3) * m0[None, None, None, :]
            + jnp.take(xh, j1, axis=3) * m1[None, None, None, :])


def up_light_reference(x_nchw, skp_nchw, w_oihw, b):
    cat = jnp.concatenate([_upsample2x_bilinear_ref(x_nchw), skp_nchw], axis=1)
    y = jax.lax.conv_general_dilated(
        cat, w_oihw, window_strides=(1, 1), padding=((1, 1), (1, 1)),
        dimension_numbers=("NCHW", "OIHW", "NCHW"),
        precision=jax.lax.Precision.HIGHEST)
    y = y + b[None, :, None, None]
    return jnp.where(y > 0, y, 0.1 * y)


if __name__ == "__main__":
    # Small deterministic example:
    #   x: (N=2, Cx=4, 8, 8)  -> upsampled to 16x16
    #   skpCn: (2, Cs=4, 16, 16); inChannels = 8, outChannels = 8
    key = jax.random.PRNGKey(0)
    kx, ks, kw, kb = jax.random.split(key, 4)

    N, Cx, h, w = 2, 4, 8, 8
    Cs = 4
    Cin, Cout = Cx + Cs, 8

    x = jax.random.normal(kx, (N, Cx, h, w), dtype=jnp.float32)
    skp = jax.random.normal(ks, (N, Cs, 2 * h, 2 * w), dtype=jnp.float32)
    # Conv2d(Cin, Cout, 3, padding=1, bias=True)-style init
    fan_in = Cin * 3 * 3
    bound = 1.0 / float(np.sqrt(fan_in))
    w_conv = jax.random.uniform(kw, (Cout, Cin, 3, 3), jnp.float32, -bound, bound)
    b_conv = jax.random.uniform(kb, (Cout,), jnp.float32, -bound, bound)

    out = up_light_forward(x, skp, w_conv, b_conv)
    out = jax.block_until_ready(out)

    ref = up_light_reference(x, skp, w_conv, b_conv)
    assert out.shape == (N, Cout, 2 * h, 2 * w)
    # Tolerance covers the bf16 MXU operands in the Pallas conv path vs the
    # f32 XLA reference conv; structural bugs are >> 1e-1.
    assert jnp.allclose(out, ref, atol=2e-2, rtol=2e-2), "mismatch vs reference"

    print("KERNEL_OK")
</pallas_src>

<mosaic_0001>
module attributes {stable_mosaic.version = 11 : i64} {
  func.func @_up_light_kernel(%arg0: i32, %arg1: memref<1x8x256xf32, #tpu.memory_space<vmem>>, %arg2: memref<1x8x256xf32, #tpu.memory_space<vmem>>, %arg3: memref<16x256xf32, #tpu.memory_space<vmem>>, %arg4: memref<8x144xbf16, #tpu.memory_space<vmem>>, %arg5: memref<8x1xf32, #tpu.memory_space<vmem>>, %arg6: memref<1x8x256xf32, #tpu.memory_space<vmem>>, %arg7: memref<144x256xbf16, #tpu.memory_space<vmem>>) attributes {dimension_semantics = [#tpu.dimension_semantics<parallel>], iteration_bounds = array<i64: 2>, scalar_prefetch = 0 : i64, scratch_operands = 1 : i64, tpu.core_type = #tpu.core_type<tc>, window_params = [{transform_indices = @transform_0, window_bounds = array<i64: 1, 8, 256>}, {transform_indices = @transform_1, window_bounds = array<i64: 1, 8, 256>}, {pipeline_mode = #tpu.pipeline_mode<synchronous>, transform_indices = @transform_2, window_bounds = array<i64: 16, 256>}, {pipeline_mode = #tpu.pipeline_mode<synchronous>, transform_indices = @transform_3, window_bounds = array<i64: 8, 144>}, {pipeline_mode = #tpu.pipeline_mode<synchronous>, transform_indices = @transform_4, window_bounds = array<i64: 8, 1>}, {transform_indices = @transform_5, window_bounds = array<i64: 1, 8, 256>}]} {
    %c0 = arith.constant 0 : index
    %c0_0 = arith.constant 0 : index
    %c0_1 = arith.constant 0 : index
    %0 = vector.load %arg1[%c0, %c0_0, %c0_1] : memref<1x8x256xf32, #tpu.memory_space<vmem>>, vector<1x8x256xf32>
    %1 = vector.shape_cast %0 : vector<1x8x256xf32> to vector<8x256xf32>
    %c1_i32 = arith.constant 1 : i32
    %2 = tpu.dynamic_rotate %1 by %c1_i32 dim 1 : vector<8x256xf32>, i32 -> vector<8x256xf32>
    %c255_i32 = arith.constant 255 : i32
    %3 = tpu.dynamic_rotate %1 by %c255_i32 dim 1 : vector<8x256xf32>, i32 -> vector<8x256xf32>
    %c0_2 = arith.constant 0 : index
    %c0_3 = arith.constant 0 : index
    %4 = vector.load %arg3[%c0_2, %c0_3] : memref<16x256xf32, #tpu.memory_space<vmem>>, vector<1x256xf32>
    %5 = vector.shape_cast %4 : vector<1x256xf32> to vector<256xf32>
    %6 = vector.shape_cast %5 : vector<256xf32> to vector<1x256xf32>
    %7 = vector.broadcast %6 : vector<1x256xf32> to vector<8x256xf32>
    %8 = arith.mulf %7, %1 : vector<8x256xf32>
    %c1 = arith.constant 1 : index
    %c0_4 = arith.constant 0 : index
    %9 = vector.load %arg3[%c1, %c0_4] : memref<16x256xf32, #tpu.memory_space<vmem>>, vector<1x256xf32>
    %10 = vector.shape_cast %9 : vector<1x256xf32> to vector<256xf32>
    %11 = vector.shape_cast %10 : vector<256xf32> to vector<1x256xf32>
    %12 = vector.broadcast %11 : vector<1x256xf32> to vector<8x256xf32>
    %13 = arith.mulf %12, %2 : vector<8x256xf32>
    %14 = arith.addf %8, %13 : vector<8x256xf32>
    %c2 = arith.constant 2 : index
    %c0_5 = arith.constant 0 : index
    %15 = vector.load %arg3[%c2, %c0_5] : memref<16x256xf32, #tpu.memory_space<vmem>>, vector<1x256xf32>
    %16 = vector.shape_cast %15 : vector<1x256xf32> to vector<256xf32>
    %17 = vector.shape_cast %16 : vector<256xf32> to vector<1x256xf32>
    %18 = vector.broadcast %17 : vector<1x256xf32> to vector<8x256xf32>
    %19 = arith.mulf %18, %3 : vector<8x256xf32>
    %20 = arith.addf %14, %19 : vector<8x256xf32>
    %c16_i32 = arith.constant 16 : i32
    %21 = tpu.dynamic_rotate %20 by %c16_i32 dim 1 : vector<8x256xf32>, i32 -> vector<8x256xf32>
    %c240_i32 = arith.constant 240 : i32
    %22 = tpu.dynamic_rotate %20 by %c240_i32 dim 1 : vector<8x256xf32>, i32 -> vector<8x256xf32>
    %c3 = arith.constant 3 : index
    %c0_6 = arith.constant 0 : index
    %23 = vector.load %arg3[%c3, %c0_6] : memref<16x256xf32, #tpu.memory_space<vmem>>, vector<1x256xf32>
    %24 = vector.shape_cast %23 : vector<1x256xf32> to vector<256xf32>
    %25 = vector.shape_cast %24 : vector<256xf32> to vector<1x256xf32>
    %26 = vector.broadcast %25 : vector<1x256xf32> to vector<8x256xf32>
    %27 = arith.mulf %26, %20 : vector<8x256xf32>
    %c4 = arith.constant 4 : index
    %c0_7 = arith.constant 0 : index
    %28 = vector.load %arg3[%c4, %c0_7] : memref<16x256xf32, #tpu.memory_space<vmem>>, vector<1x256xf32>
    %29 = vector.shape_cast %28 : vector<1x256xf32> to vector<256xf32>
    %30 = vector.shape_cast %29 : vector<256xf32> to vector<1x256xf32>
    %31 = vector.broadcast %30 : vector<1x256xf32> to vector<8x256xf32>
    %32 = arith.mulf %31, %21 : vector<8x256xf32>
    %33 = arith.addf %27, %32 : vector<8x256xf32>
    %c5 = arith.constant 5 : index
    %c0_8 = arith.constant 0 : index
    %34 = vector.load %arg3[%c5, %c0_8] : memref<16x256xf32, #tpu.memory_space<vmem>>, vector<1x256xf32>
    %35 = vector.shape_cast %34 : vector<1x256xf32> to vector<256xf32>
    %36 = vector.shape_cast %35 : vector<256xf32> to vector<1x256xf32>
    %37 = vector.broadcast %36 : vector<1x256xf32> to vector<8x256xf32>
    %38 = arith.mulf %37, %22 : vector<8x256xf32>
    %39 = arith.addf %33, %38 : vector<8x256xf32>
    %c0_9 = arith.constant 0 : index
    %c0_10 = arith.constant 0 : index
    %c0_11 = arith.constant 0 : index
    %40 = vector.load %arg2[%c0_9, %c0_10, %c0_11] : memref<1x8x256xf32, #tpu.memory_space<vmem>>, vector<1x8x256xf32>
    %41 = vector.shape_cast %40 : vector<1x8x256xf32> to vector<8x256xf32>
    %42 = tpu.concatenate %39, %41 in 0 : vector<8x256xf32>, vector<8x256xf32> -> vector<16x256xf32>
    %c17_i32 = arith.constant 17 : i32
    %43 = tpu.dynamic_rotate %42 by %c17_i32 dim 1 : vector<16x256xf32>, i32 -> vector<16x256xf32>
    %c6 = arith.constant 6 : index
    %c0_12 = arith.constant 0 : index
    %44 = vector.load %arg3[%c6, %c0_12] : memref<16x256xf32, #tpu.memory_space<vmem>>, vector<1x256xf32>
    %45 = vector.shape_cast %44 : vector<1x256xf32> to vector<256xf32>
    %46 = vector.shape_cast %45 : vector<256xf32> to vector<1x256xf32>
    %47 = vector.broadcast %46 : vector<1x256xf32> to vector<16x256xf32>
    %48 = arith.mulf %43, %47 : vector<16x256xf32>
    %49 = arith.truncf %48 : vector<16x256xf32> to vector<16x256xbf16>
    %c0_13 = arith.constant 0 : index
    %c0_14 = arith.constant 0 : index
    %50 = vector.load %arg7[%c0_13, %c0_14] : memref<144x256xbf16, #tpu.memory_space<vmem>>, vector<16x256xbf16>
    tpu.vector_store %arg7[%c0_13, %c0_14], %49 {strides = array<i32>} : memref<144x256xbf16, #tpu.memory_space<vmem>>, vector<16x256xbf16>,
    %c16_i32_15 = arith.constant 16 : i32
    %51 = tpu.dynamic_rotate %42 by %c16_i32_15 dim 1 : vector<16x256xf32>, i32 -> vector<16x256xf32>
    %c7 = arith.constant 7 : index
    %c0_16 = arith.constant 0 : index
    %52 = vector.load %arg3[%c7, %c0_16] : memref<16x256xf32, #tpu.memory_space<vmem>>, vector<1x256xf32>
    %53 = vector.shape_cast %52 : vector<1x256xf32> to vector<256xf32>
    %54 = vector.shape_cast %53 : vector<256xf32> to vector<1x256xf32>
    %55 = vector.broadcast %54 : vector<1x256xf32> to vector<16x256xf32>
    %56 = arith.mulf %51, %55 : vector<16x256xf32>
    %57 = arith.truncf %56 : vector<16x256xf32> to vector<16x256xbf16>
    %c16 = arith.constant 16 : index
    %c0_17 = arith.constant 0 : index
    %58 = vector.load %arg7[%c16, %c0_17] : memref<144x256xbf16, #tpu.memory_space<vmem>>, vector<16x256xbf16>
    tpu.vector_store %arg7[%c16, %c0_17], %57 {strides = array<i32>} : memref<144x256xbf16, #tpu.memory_space<vmem>>, vector<16x256xbf16>,
    %c15_i32 = arith.constant 15 : i32
    %59 = tpu.dynamic_rotate %42 by %c15_i32 dim 1 : vector<16x256xf32>, i32 -> vector<16x256xf32>
    %c8 = arith.constant 8 : index
    %c0_18 = arith.constant 0 : index
    %60 = vector.load %arg3[%c8, %c0_18] : memref<16x256xf32, #tpu.memory_space<vmem>>, vector<1x256xf32>
    %61 = vector.shape_cast %60 : vector<1x256xf32> to vector<256xf32>
    %62 = vector.shape_cast %61 : vector<256xf32> to vector<1x256xf32>
    %63 = vector.broadcast %62 : vector<1x256xf32> to vector<16x256xf32>
    %64 = arith.mulf %59, %63 : vector<16x256xf32>
    %65 = arith.truncf %64 : vector<16x256xf32> to vector<16x256xbf16>
    %c32 = arith.constant 32 : index
    %c0_19 = arith.constant 0 : index
    %66 = vector.load %arg7[%c32, %c0_19] : memref<144x256xbf16, #tpu.memory_space<vmem>>, vector<16x256xbf16>
    tpu.vector_store %arg7[%c32, %c0_19], %65 {strides = array<i32>} : memref<144x256xbf16, #tpu.memory_space<vmem>>, vector<16x256xbf16>,
    %c1_i32_20 = arith.constant 1 : i32
    %67 = tpu.dynamic_rotate %42 by %c1_i32_20 dim 1 : vector<16x256xf32>, i32 -> vector<16x256xf32>
    %c9 = arith.constant 9 : index
    %c0_21 = arith.constant 0 : index
    %68 = vector.load %arg3[%c9, %c0_21] : memref<16x256xf32, #tpu.memory_space<vmem>>, vector<1x256xf32>
    %69 = vector.shape_cast %68 : vector<1x256xf32> to vector<256xf32>
    %70 = vector.shape_cast %69 : vector<256xf32> to vector<1x256xf32>
    %71 = vector.broadcast %70 : vector<1x256xf32> to vector<16x256xf32>
    %72 = arith.mulf %67, %71 : vector<16x256xf32>
    %73 = arith.truncf %72 : vector<16x256xf32> to vector<16x256xbf16>
    %c48 = arith.constant 48 : index
    %c0_22 = arith.constant 0 : index
    %74 = vector.load %arg7[%c48, %c0_22] : memref<144x256xbf16, #tpu.memory_space<vmem>>, vector<16x256xbf16>
    tpu.vector_store %arg7[%c48, %c0_22], %73 {strides = array<i32>} : memref<144x256xbf16, #tpu.memory_space<vmem>>, vector<16x256xbf16>,
    %75 = arith.truncf %42 : vector<16x256xf32> to vector<16x256xbf16>
    %c64 = arith.constant 64 : index
    %c0_23 = arith.constant 0 : index
    %76 = vector.load %arg7[%c64, %c0_23] : memref<144x256xbf16, #tpu.memory_space<vmem>>, vector<16x256xbf16>
    tpu.vector_store %arg7[%c64, %c0_23], %75 {strides = array<i32>} : memref<144x256xbf16, #tpu.memory_space<vmem>>, vector<16x256xbf16>,
    %c255_i32_24 = arith.constant 255 : i32
    %77 = tpu.dynamic_rotate %42 by %c255_i32_24 dim 1 : vector<16x256xf32>, i32 -> vector<16x256xf32>
    %c10 = arith.constant 10 : index
    %c0_25 = arith.constant 0 : index
    %78 = vector.load %arg3[%c10, %c0_25] : memref<16x256xf32, #tpu.memory_space<vmem>>, vector<1x256xf32>
    %79 = vector.shape_cast %78 : vector<1x256xf32> to vector<256xf32>
    %80 = vector.shape_cast %79 : vector<256xf32> to vector<1x256xf32>
    %81 = vector.broadcast %80 : vector<1x256xf32> to vector<16x256xf32>
    %82 = arith.mulf %77, %81 : vector<16x256xf32>
    %83 = arith.truncf %82 : vector<16x256xf32> to vector<16x256xbf16>
    %c80 = arith.constant 80 : index
    %c0_26 = arith.constant 0 : index
    %84 = vector.load %arg7[%c80, %c0_26] : memref<144x256xbf16, #tpu.memory_space<vmem>>, vector<16x256xbf16>
    tpu.vector_store %arg7[%c80, %c0_26], %83 {strides = array<i32>} : memref<144x256xbf16, #tpu.memory_space<vmem>>, vector<16x256xbf16>,
    %c241_i32 = arith.constant 241 : i32
    %85 = tpu.dynamic_rotate %42 by %c241_i32 dim 1 : vector<16x256xf32>, i32 -> vector<16x256xf32>
    %c11 = arith.constant 11 : index
    %c0_27 = arith.constant 0 : index
    %86 = vector.load %arg3[%c11, %c0_27] : memref<16x256xf32, #tpu.memory_space<vmem>>, vector<1x256xf32>
    %87 = vector.shape_cast %86 : vector<1x256xf32> to vector<256xf32>
    %88 = vector.shape_cast %87 : vector<256xf32> to vector<1x256xf32>
    %89 = vector.broadcast %88 : vector<1x256xf32> to vector<16x256xf32>
    %90 = arith.mulf %85, %89 : vector<16x256xf32>
    %91 = arith.truncf %90 : vector<16x256xf32> to vector<16x256xbf16>
    %c96 = arith.constant 96 : index
    %c0_28 = arith.constant 0 : index
    %92 = vector.load %arg7[%c96, %c0_28] : memref<144x256xbf16, #tpu.memory_space<vmem>>, vector<16x256xbf16>
    tpu.vector_store %arg7[%c96, %c0_28], %91 {strides = array<i32>} : memref<144x256xbf16, #tpu.memory_space<vmem>>, vector<16x256xbf16>,
    %c240_i32_29 = arith.constant 240 : i32
    %93 = tpu.dynamic_rotate %42 by %c240_i32_29 dim 1 : vector<16x256xf32>, i32 -> vector<16x256xf32>
    %c12 = arith.constant 12 : index
    %c0_30 = arith.constant 0 : index
    %94 = vector.load %arg3[%c12, %c0_30] : memref<16x256xf32, #tpu.memory_space<vmem>>, vector<1x256xf32>
    %95 = vector.shape_cast %94 : vector<1x256xf32> to vector<256xf32>
    %96 = vector.shape_cast %95 : vector<256xf32> to vector<1x256xf32>
    %97 = vector.broadcast %96 : vector<1x256xf32> to vector<16x256xf32>
    %98 = arith.mulf %93, %97 : vector<16x256xf32>
    %99 = arith.truncf %98 : vector<16x256xf32> to vector<16x256xbf16>
    %c112 = arith.constant 112 : index
    %c0_31 = arith.constant 0 : index
    %100 = vector.load %arg7[%c112, %c0_31] : memref<144x256xbf16, #tpu.memory_space<vmem>>, vector<16x256xbf16>
    tpu.vector_store %arg7[%c112, %c0_31], %99 {strides = array<i32>} : memref<144x256xbf16, #tpu.memory_space<vmem>>, vector<16x256xbf16>,
    %c239_i32 = arith.constant 239 : i32
    %101 = tpu.dynamic_rotate %42 by %c239_i32 dim 1 : vector<16x256xf32>, i32 -> vector<16x256xf32>
    %c13 = arith.constant 13 : index
    %c0_32 = arith.constant 0 : index
    %102 = vector.load %arg3[%c13, %c0_32] : memref<16x256xf32, #tpu.memory_space<vmem>>, vector<1x256xf32>
    %103 = vector.shape_cast %102 : vector<1x256xf32> to vector<256xf32>
    %104 = vector.shape_cast %103 : vector<256xf32> to vector<1x256xf32>
    %105 = vector.broadcast %104 : vector<1x256xf32> to vector<16x256xf32>
    %106 = arith.mulf %101, %105 : vector<16x256xf32>
    %107 = arith.truncf %106 : vector<16x256xf32> to vector<16x256xbf16>
    %c128 = arith.constant 128 : index
    %c0_33 = arith.constant 0 : index
    %108 = vector.load %arg7[%c128, %c0_33] : memref<144x256xbf16, #tpu.memory_space<vmem>>, vector<16x256xbf16>
    tpu.vector_store %arg7[%c128, %c0_33], %107 {strides = array<i32>} : memref<144x256xbf16, #tpu.memory_space<vmem>>, vector<16x256xbf16>,
    %c0_34 = arith.constant 0 : index
    %c0_35 = arith.constant 0 : index
    %109 = vector.load %arg4[%c0_34, %c0_35] : memref<8x144xbf16, #tpu.memory_space<vmem>>, vector<8x144xbf16>
    %c0_36 = arith.constant 0 : index
    %c0_37 = arith.constant 0 : index
    %110 = vector.load %arg7[%c0_36, %c0_37] : memref<144x256xbf16, #tpu.memory_space<vmem>>, vector<144x256xbf16>
    %cst = arith.constant dense<0.000000e+00> : vector<8x256xf32>
    %111 = tpu.matmul %109, %110, %cst {dimension_numbers = #tpu.dot_dimension_numbers<[1], [0], [0], [1], [0, 0, 1, 1], [], []>} : vector<8x144xbf16>, vector<144x256xbf16>, vector<8x256xf32> -> vector<8x256xf32>
    %c0_38 = arith.constant 0 : index
    %c0_39 = arith.constant 0 : index
    %112 = vector.load %arg5[%c0_38, %c0_39] : memref<8x1xf32, #tpu.memory_space<vmem>>, vector<8x1xf32>
    %113 = vector.broadcast %112 : vector<8x1xf32> to vector<8x256xf32>
    %114 = arith.addf %111, %113 : vector<8x256xf32>
    %cst_40 = arith.constant 1.000000e-01 : f32
    %115 = vector.broadcast %cst_40 : f32 to vector<8x256xf32>
    %116 = arith.mulf %115, %114 : vector<8x256xf32>
    %117 = arith.maximumf %114, %116 : vector<8x256xf32>
    %c0_41 = arith.constant 0 : index
    %c0_42 = arith.constant 0 : index
    %c0_43 = arith.constant 0 : index
    %118 = vector.load %arg6[%c0_41, %c0_42, %c0_43] : memref<1x8x256xf32, #tpu.memory_space<vmem>>, vector<1x8x256xf32>
    %119 = vector.shape_cast %118 : vector<1x8x256xf32> to vector<8x256xf32>
    %120 = vector.shape_cast %117 : vector<8x256xf32> to vector<1x8x256xf32>
    tpu.vector_store %arg6[%c0_41, %c0_42, %c0_43], %120 {strides = array<i32>} : memref<1x8x256xf32, #tpu.memory_space<vmem>>, vector<1x8x256xf32>,
    return
  }
  func.func @transform_0(%arg0: i32) -> (i32, i32, i32) {
    %c0_i32 = arith.constant 0 : i32
    %c0_i32_0 = arith.constant 0 : i32
    %c0_i32_1 = arith.constant 0 : i32
    return %arg0, %c0_i32, %c0_i32_0 : i32, i32, i32
  }
  func.func @transform_1(%arg0: i32) -> (i32, i32, i32) {
    %c0_i32 = arith.constant 0 : i32
    %c0_i32_0 = arith.constant 0 : i32
    %c0_i32_1 = arith.constant 0 : i32
    return %arg0, %c0_i32, %c0_i32_0 : i32, i32, i32
  }
  func.func @transform_2(%arg0: i32) -> (i32, i32) {
    %c0_i32 = arith.constant 0 : i32
    %c0_i32_0 = arith.constant 0 : i32
    %c0_i32_1 = arith.constant 0 : i32
    return %c0_i32, %c0_i32_0 : i32, i32
  }
  func.func @transform_3(%arg0: i32) -> (i32, i32) {
    %c0_i32 = arith.constant 0 : i32
    %c0_i32_0 = arith.constant 0 : i32
    %c0_i32_1 = arith.constant 0 : i32
    return %c0_i32, %c0_i32_0 : i32, i32
  }
  func.func @transform_4(%arg0: i32) -> (i32, i32) {
    %c0_i32 = arith.constant 0 : i32
    %c0_i32_0 = arith.constant 0 : i32
    %c0_i32_1 = arith.constant 0 : i32
    return %c0_i32, %c0_i32_0 : i32, i32
  }
  func.func @transform_5(%arg0: i32) -> (i32, i32, i32) {
    %c0_i32 = arith.constant 0 : i32
    %c0_i32_0 = arith.constant 0 : i32
    %c0_i32_1 = arith.constant 0 : i32
    return %arg0, %c0_i32, %c0_i32_0 : i32, i32, i32
  }
}

</mosaic_0001>

<llo_original>
// kernel: up_light_forward.1
$region0: #{up_light_forward.1}
  #allocation0 [shape = 'u32[]', space=smem, size = 0x4, offset = 0x4, fixed_abs, tag = 'smem constant byte address 0x4 - core index']
  #allocation1 [shape = 'u32[144,128]{1,0:T(1,128)}', space=vmem, size = 0x12000, scoped, tag = 'internal scratch']
  #allocation2 [shape = 'bf16[144,256]{1,0:T(16,128)(2,1)}', space=vmem, size = 0x12000, scoped, tag = 'scratch operand']
  %s0 = inlined_call_operand.vmem [shape: f32[2,8,256], index: 0, kind: input, shape index: {}]
  %s1 = inlined_call_operand.vmem [shape: f32[2,8,256], index: 1, kind: input, shape index: {}]
  %s2 = inlined_call_operand.vmem [shape: f32[16,256], index: 2, kind: input, shape index: {}]
  %s3 = inlined_call_operand.vmem [shape: bf16[8,144], index: 3, kind: input, shape index: {}]
  %s4 = inlined_call_operand.vmem [shape: f32[8,1], index: 4, kind: input, shape index: {}]
  %s5 = inlined_call_operand.vmem [shape: f32[2,8,256], index: 5, kind: output, shape index: {}]
  %s6 = sld [smem:[#allocation0]]
  $region53: #{up_light_forward.1} parent=0
    _
  %s8 = ssub.s32 1, %s6
  %s9 = scalar_select 0, %s8, %s6
  loop: start=0, step=1, limit=4
  $region2: #{up_light_forward.1} parent=0 // loop_pre_header
    _
  $region3: #{up_light_forward.1} parent=0 // loop_header
    %s11 = sphi 0, %s15
    %p12 = scmp.ge.s32.totalorder %s11, 4
    %s21 = sphi 0, %s23
    %s24 = sphi 0, %s21
    %s25 = sphi 0, %s24
    %s41 = sphi 0, %s25
    %s47 = sphi 0, %s49
    %s50 = sphi 0, %s47
    %s51 = sphi 0, %s50
    %s67 = sphi 0, %s51
    %s71 = sphi 0, %s71
    %s73 = sphi 0, %s71
    %s74 = sphi 0, %s73
    %s88 = sphi 0, %s74
    %s92 = sphi 0, %s92
    %s94 = sphi 0, %s92
    %s95 = sphi 0, %s94
    %s109 = sphi 0, %s95
    %s113 = sphi 0, %s113
    %s115 = sphi 0, %s113
    %s116 = sphi 0, %s115
    %s130 = sphi 0, %s116
    %s136 = sphi 0, %s138
    %s139 = sphi 0, %s136
    %s140 = sphi 0, %s139
    %s156 = sphi 0, %s140
  $region4: #{up_light_forward.1} parent=0 // loop_header_branch
    %14 = sbr.rel (%p12) target = $region8
  $region5: #{up_light_forward.1} parent=0 // loop_body
    %s16 = ssub.s32 %s11, 1
    %s17 = ssub.s32 %s11, 2
    %s18 = sadd.s32 %s11, 1
    %s19 = ssub.s32 %s11, %s18
    %p20 = scmp.eq.s32.totalorder %s19, 0
    %s22 = sadd.s32 %s21, 1
    %s23 = scalar_select %p20, %s21, %s22
    %p26 = pneg %p20
    %p27 = scmp.eq.s32.totalorder %s11, 1
    %p28 = por %p26, %p27
    %p29 = scmp.ne.s32.totalorder %s21, %s24
    %p30 = scmp.eq.s32.totalorder %s11, 0
    %p31 = por %p29, %p30
    %p32 = scmp.ne.s32.totalorder %s21, %s24
    %p33 = scmp.eq.s32.totalorder %s16, 1
    %p34 = por %p32, %p33
    %p35 = scmp.ne.s32.totalorder %s24, %s25
    %p36 = scmp.eq.s32.totalorder %s16, 0
    %p37 = por %p35, %p36
    %p38 = scmp.ne.s32.totalorder %s24, %s25
    %p39 = scmp.eq.s32.totalorder %s17, 1
    %p40 = por %p38, %p39
    %p42 = scmp.ne.s32.totalorder %s25, %s41
    %p43 = scmp.eq.s32.totalorder %s17, 0
    %p44 = por %p42, %p43
    %s45 = ssub.s32 %s11, %s18
    %p46 = scmp.eq.s32.totalorder %s45, 0
    %s48 = sadd.s32 %s47, 1
    %s49 = scalar_select %p46, %s47, %s48
    %p52 = pneg %p46
    %p53 = scmp.eq.s32.totalorder %s11, 1
    %p54 = por %p52, %p53
    %p55 = scmp.ne.s32.totalorder %s47, %s50
    %p56 = scmp.eq.s32.totalorder %s11, 0
    %p57 = por %p55, %p56
    %p58 = scmp.ne.s32.totalorder %s47, %s50
    %p59 = scmp.eq.s32.totalorder %s16, 1
    %p60 = por %p58, %p59
    %p61 = scmp.ne.s32.totalorder %s50, %s51
    %p62 = scmp.eq.s32.totalorder %s16, 0
    %p63 = por %p61, %p62
    %p64 = scmp.ne.s32.totalorder %s50, %s51
    %p65 = scmp.eq.s32.totalorder %s17, 1
    %p66 = por %p64, %p65
    %p68 = scmp.ne.s32.totalorder %s51, %s67
    %p69 = scmp.eq.s32.totalorder %s17, 0
    %p70 = por %p68, %p69
    %s72 = sadd.s32 %s71, 1
    %p75 = scmp.eq.s32.totalorder %s11, 1
    %p76 = scmp.ne.s32.totalorder %s71, %s73
    %p77 = scmp.eq.s32.totalorder %s11, 0
    %p78 = por %p76, %p77
    %p79 = scmp.ne.s32.totalorder %s71, %s73
    %p80 = scmp.eq.s32.totalorder %s16, 1
    %p81 = por %p79, %p80
    %p82 = scmp.ne.s32.totalorder %s73, %s74
    %p83 = scmp.eq.s32.totalorder %s16, 0
    %p84 = por %p82, %p83
    %p85 = scmp.ne.s32.totalorder %s73, %s74
    %p86 = scmp.eq.s32.totalorder %s17, 1
    %p87 = por %p85, %p86
    %p89 = scmp.ne.s32.totalorder %s74, %s88
    %p90 = scmp.eq.s32.totalorder %s17, 0
    %p91 = por %p89, %p90
    %s93 = sadd.s32 %s92, 1
    %p96 = scmp.eq.s32.totalorder %s11, 1
    %p97 = scmp.ne.s32.totalorder %s92, %s94
    %p98 = scmp.eq.s32.totalorder %s11, 0
    %p99 = por %p97, %p98
    %p100 = scmp.ne.s32.totalorder %s92, %s94
    %p101 = scmp.eq.s32.totalorder %s16, 1
    %p102 = por %p100, %p101
    %p103 = scmp.ne.s32.totalorder %s94, %s95
    %p104 = scmp.eq.s32.totalorder %s16, 0
    %p105 = por %p103, %p104
    %p106 = scmp.ne.s32.totalorder %s94, %s95
    %p107 = scmp.eq.s32.totalorder %s17, 1
    %p108 = por %p106, %p107
    %p110 = scmp.ne.s32.totalorder %s95, %s109
    %p111 = scmp.eq.s32.totalorder %s17, 0
    %p112 = por %p110, %p111
    %s114 = sadd.s32 %s113, 1
    %p117 = scmp.eq.s32.totalorder %s11, 1
    %p118 = scmp.ne.s32.totalorder %s113, %s115
    %p119 = scmp.eq.s32.totalorder %s11, 0
    %p120 = por %p118, %p119
    %p121 = scmp.ne.s32.totalorder %s113, %s115
    %p122 = scmp.eq.s32.totalorder %s16, 1
    %p123 = por %p121, %p122
    %p124 = scmp.ne.s32.totalorder %s115, %s116
    %p125 = scmp.eq.s32.totalorder %s16, 0
    %p126 = por %p124, %p125
    %p127 = scmp.ne.s32.totalorder %s115, %s116
    %p128 = scmp.eq.s32.totalorder %s17, 1
    %p129 = por %p127, %p128
    %p131 = scmp.ne.s32.totalorder %s116, %s130
    %p132 = scmp.eq.s32.totalorder %s17, 0
    %p133 = por %p131, %p132
    %s134 = ssub.s32 %s11, %s18
    %p135 = scmp.eq.s32.totalorder %s134, 0
    %s137 = sadd.s32 %s136, 1
    %s138 = scalar_select %p135, %s136, %s137
    %p141 = pneg %p135
    %p142 = scmp.eq.s32.totalorder %s11, 1
    %p143 = por %p141, %p142
    %p144 = scmp.ne.s32.totalorder %s136, %s139
    %p145 = scmp.eq.s32.totalorder %s11, 0
    %p146 = por %p144, %p145
    %p147 = scmp.ne.s32.totalorder %s136, %s139
    %p148 = scmp.eq.s32.totalorder %s16, 1
    %p149 = por %p147, %p148
    %p150 = scmp.ne.s32.totalorder %s139, %s140
    %p151 = scmp.eq.s32.totalorder %s16, 0
    %p152 = por %p150, %p151
    %p153 = scmp.ne.s32.totalorder %s139, %s140
    %p154 = scmp.eq.s32.totalorder %s17, 1
    %p155 = por %p153, %p154
    %p157 = scmp.ne.s32.totalorder %s140, %s156
    %p158 = scmp.eq.s32.totalorder %s17, 0
    %p159 = por %p157, %p158
    %p160 = scmp.le.s32.totalorder 1, %s11
    %p161 = scmp.lt.s32.totalorder %s11, 3
    %p162 = pnand %p160, %p161
    %p163 = pneg %p162
    // Predicated region
    $region9: #{up_light_forward.1} parent=5 // pred_check
      _
    $region10: #{up_light_forward.1} parent=5 // pred_check_branch
      %165 = sbr.rel (%p162) target = $region12
    $region11: #{up_light_forward.1} parent=5 // pred_region
      %s166 = ssub.s32 %s11, 1
      // Predicated region
      $region13: #{up_light_forward.1} parent=11 // pred_check
        %p167 = pneg %p84
      $region14: #{up_light_forward.1} parent=11 // pred_check_branch
        %169 = sbr.rel (%p167) target = $region16
      $region15: #{up_light_forward.1} parent=11 // pred_region
        _
      $region16: #{up_light_forward.1} parent=11 // pred_fallthru
        _
      // Predicated region
      $region17: #{up_light_forward.1} parent=11 // pred_check
        %p170 = pneg %p105
      $region18: #{up_light_forward.1} parent=11 // pred_check_branch
        %172 = sbr.rel (%p170) target = $region20
      $region19: #{up_light_forward.1} parent=11 // pred_region
        _
      $region20: #{up_light_forward.1} parent=11 // pred_fallthru
        _
      // Predicated region
      $region21: #{up_light_forward.1} parent=11 // pred_check
        %p173 = pneg %p126
      $region22: #{up_light_forward.1} parent=11 // pred_check_branch
        %175 = sbr.rel (%p173) target = $region24
      $region23: #{up_light_forward.1} parent=11 // pred_region
        _
      $region24: #{up_light_forward.1} parent=11 // pred_fallthru
        _
    $region12: #{up_light_forward.1} parent=5 // pred_fallthru
      _
    %p176 = scmp.lt.s32.totalorder %s11, 2
    // Predicated region
    $region25: #{up_light_forward.1} parent=5 // pred_check
      %p177 = pneg %p176
    $region26: #{up_light_forward.1} parent=5 // pred_check_branch
      %179 = sbr.rel (%p177) target = $region28
    $region27: #{up_light_forward.1} parent=5 // pred_region
      // Predicated region
      $region29: #{up_light_forward.1} parent=27 // pred_check
        %p180 = pneg %p31
      $region30: #{up_light_forward.1} parent=27 // pred_check_branch
        %182 = sbr.rel (%p180) target = $region32
      $region31: #{up_light_forward.1} parent=27 // pred_region
        %p183 = scmp.lt.s32.totalorder %s11, 1
        %s184 = scalar_select %p183, %s11, 1
        %s185 = smul.addr %s184, 2
        %s186 = smul.addr %s185, 8
        %s187 = scalar_lea.vmem %s0, %s186
      $region32: #{up_light_forward.1} parent=27 // pred_fallthru
        _
      // Predicated region
      $region33: #{up_light_forward.1} parent=27 // pred_check
        %p188 = pneg %p57
      $region34: #{up_light_forward.1} parent=27 // pred_check_branch
        %190 = sbr.rel (%p188) target = $region36
      $region35: #{up_light_forward.1} parent=27 // pred_region
        %p191 = scmp.lt.s32.totalorder %s11, 1
        %s192 = scalar_select %p191, %s11, 1
        %s193 = smul.addr %s192, 2
        %s194 = smul.addr %s193, 8
        %s195 = scalar_lea.vmem %s1, %s194
      $region36: #{up_light_forward.1} parent=27 // pred_fallthru
        _
    $region28: #{up_light_forward.1} parent=5 // pred_fallthru
      _
    %p196 = scmp.le.s32.totalorder 1, %s11
    %p197 = scmp.lt.s32.totalorder %s11, 3
    %p198 = pnand %p196, %p197
    %p199 = pneg %p198
    // Predicated region
    $region37: #{up_light_forward.1} parent=5 // pred_check
      _
    $region38: #{up_light_forward.1} parent=5 // pred_check_branch
      %201 = sbr.rel (%p198) target = $region40
    $region39: #{up_light_forward.1} parent=5 // pred_region
      %s202 = ssub.s32 %s11, 1
      %p203 = scmp.lt.s32.totalorder %s16, 1
      %s204 = scalar_select %p203, %s16, 1
      %s205 = smul.addr %s204, 2
      %s206 = smul.addr %s205, 8
      %s207 = scalar_lea.vmem %s0, %s206
      %p208 = pneg %p37
      %p209 = pneg %p34
      %p210 = scmp.lt.s32.totalorder %s16, 1
      %s211 = scalar_select %p210, %s16, 1
      %s212 = smul.addr %s211, 2
      %s213 = smul.addr %s212, 8
      %s214 = scalar_lea.vmem %s1, %s213
      %p215 = pneg %p63
      %p216 = pneg %p60
      %p217 = pneg %p84
      %p218 = pneg %p81
      %p219 = pneg %p105
      %p220 = pneg %p102
      %p221 = pneg %p126
      %p222 = pneg %p123
      %p223 = pneg %p152
      %p224 = pneg %p149
      %p225 = scmp.lt.s32.totalorder %s16, 1
      %s226 = scalar_select %p225, %s16, 1
      %s227 = smul.addr %s226, 2
      %s228 = smul.addr %s227, 8
      %s229 = scalar_lea.vmem %s5, %s228
      %p230 = scmp.lt.s32.totalorder %s16, 1
      %s231 = scalar_select %p230, %s16, 1
      %s232 = smul.addr %s231, 2
      %s233 = smul.addr %s232, 8
      %s234 = scalar_lea.vmem %s0, %s233
      %p235 = scmp.lt.s32.totalorder %s16, 1
      %s236 = scalar_select %p235, %s16, 1
      %s237 = smul.addr %s236, 2
      %s238 = smul.addr %s237, 8
      %s239 = scalar_lea.vmem %s1, %s238
      %p240 = scmp.lt.s32.totalorder %s16, 1
      %s241 = scalar_select %p240, %s16, 1
      %s242 = smul.addr %s241, 2
      %s243 = smul.addr %s242, 8
      %s244 = scalar_lea.vmem %s5, %s243
      %v246 = vld [vmem:[%s234] sm:$0xff]
      %v247 = vld [vmem:[%s234 + $0x8] sm:$0xff]
      %248 = vrot.lane.b32.xlu0 %v246, 1
      %v249 = vpop.permute.xlu0 %248
      %250 = vrot.lane.b32.xlu0 %v247, 1
      %v251 = vpop.permute.xlu0 %250
      %v252 = vlaneseq
      %v253 = vand.u32 %v252, 127
      %vm254 = vcmp.lt.s32.totalorder %v253, 1
      %v255 = vsel %vm254, %v249, %v251
      %v256 = vsel %vm254, %v251, %v249
      %257 = vrot.lane.b32.xlu0 %v246, 127
      %v258 = vpop.permute.xlu0 %257
      %259 = vrot.lane.b32.xlu0 %v247, 127
      %v260 = vpop.permute.xlu0 %259
      %vm261 = vcmp.lt.s32.totalorder %v253, 127
      %v262 = vsel %vm261, %v258, %v260
      %v263 = vsel %vm261, %v260, %v258
      %v264 = vld [vmem:[%s2] ss:$8 sm:$0x3]
      %v266 = vlaneseq
      %v267 = vshrl.u32 %v266, 7
      %v268 = vsub.s32 0, %v267
      %v269 = vrot.slane %v264, %v268
      %v270 = vlaneseq
      %v271 = vshrl.u32 %v270, 7
      %v272 = vsub.s32 1, %v271
      %v273 = vrot.slane %v264, %v272
      %v276 = vmul.f32 %v269, %v246
      %v277 = vmul.f32 %v273, %v247
      %s278 = scalar_lea.vmem %s2, 1
      %v279 = vld [vmem:[%s278] ss:$8 sm:$0x3]
      %v281 = vlaneseq
      %v282 = vshrl.u32 %v281, 7
      %v283 = vsub.s32 0, %v282
      %v284 = vrot.slane %v279, %v283
      %v285 = vlaneseq
      %v286 = vshrl.u32 %v285, 7
      %v287 = vsub.s32 1, %v286
      %v288 = vrot.slane %v279, %v287
      %v291 = vmul.f32 %v284, %v256
      %v292 = vmul.f32 %v288, %v255
      %v293 = vadd.f32 %v276, %v291
      %v294 = vadd.f32 %v277, %v292
      %s295 = scalar_lea.vmem %s2, 2
      %v296 = vld [vmem:[%s295] ss:$8 sm:$0x3]
      %v298 = vlaneseq
      %v299 = vshrl.u32 %v298, 7
      %v300 = vsub.s32 0, %v299
      %v301 = vrot.slane %v296, %v300
      %v302 = vlaneseq
      %v303 = vshrl.u32 %v302, 7
      %v304 = vsub.s32 1, %v303
      %v305 = vrot.slane %v296, %v304
      %v308 = vmul.f32 %v301, %v262
      %v309 = vmul.f32 %v305, %v263
      %v310 = vadd.f32 %v293, %v308
      %v311 = vadd.f32 %v294, %v309
      %312 = vrot.lane.b32.xlu0 %v310, 16
      %v313 = vpop.permute.xlu0 %312
      %314 = vrot.lane.b32.xlu0 %v311, 16
      %v315 = vpop.permute.xlu0 %314
      %vm316 = vcmp.lt.s32.totalorder %v253, 16
      %v317 = vsel %vm316, %v313, %v315
      %v318 = vsel %vm316, %v315, %v313
      %319 = vrot.lane.b32.xlu0 %v310, 112
      %v320 = vpop.permute.xlu0 %319
      %321 = vrot.lane.b32.xlu0 %v311, 112
      %v322 = vpop.permute.xlu0 %321
      %vm323 = vcmp.lt.s32.totalorder %v253, 112
      %v324 = vsel %vm323, %v320, %v322
      %v325 = vsel %vm323, %v322, %v320
      %s326 = scalar_lea.vmem %s2, 3
      %v327 = vld [vmem:[%s326] ss:$8 sm:$0x3]
      %v329 = vlaneseq
      %v330 = vshrl.u32 %v329, 7
      %v331 = vsub.s32 0, %v330
      %v332 = vrot.slane %v327, %v331
      %v333 = vlaneseq
      %v334 = vshrl.u32 %v333, 7
      %v335 = vsub.s32 1, %v334
      %v336 = vrot.slane %v327, %v335
      %v339 = vmul.f32 %v332, %v310
      %v340 = vmul.f32 %v336, %v311
      %s341 = scalar_lea.vmem %s2, 4
      %v342 = vld [vmem:[%s341] ss:$8 sm:$0x3]
      %v344 = vlaneseq
      %v345 = vshrl.u32 %v344, 7
      %v346 = vsub.s32 0, %v345
      %v347 = vrot.slane %v342, %v346
      %v348 = vlaneseq
      %v349 = vshrl.u32 %v348, 7
      %v350 = vsub.s32 1, %v349
      %v351 = vrot.slane %v342, %v350
      %v354 = vmul.f32 %v347, %v318
      %v355 = vmul.f32 %v351, %v317
      %v356 = vadd.f32 %v339, %v354
      %v357 = vadd.f32 %v340, %v355
      %s358 = scalar_lea.vmem %s2, 5
      %v359 = vld [vmem:[%s358] ss:$8 sm:$0x3]
      %v361 = vlaneseq
      %v362 = vshrl.u32 %v361, 7
      %v363 = vsub.s32 0, %v362
      %v364 = vrot.slane %v359, %v363
      %v365 = vlaneseq
      %v366 = vshrl.u32 %v365, 7
      %v367 = vsub.s32 1, %v366
      %v368 = vrot.slane %v359, %v367
      %v371 = vmul.f32 %v364, %v324
      %v372 = vmul.f32 %v368, %v325
      %v373 = vadd.f32 %v356, %v371
      %v374 = vadd.f32 %v357, %v372
      %v375 = vld [vmem:[%s239] sm:$0xff]
      %v376 = vld [vmem:[%s239 + $0x8] sm:$0xff]
      %377 = vrot.lane.b32.xlu0 %v373, 17
      %v378 = vpop.permute.xlu0 %377
      %379 = vrot.lane.b32.xlu0 %v375, 17
      %v380 = vpop.permute.xlu0 %379
      %381 = vrot.lane.b32.xlu0 %v374, 17
      %v382 = vpop.permute.xlu0 %381
      %383 = vrot.lane.b32.xlu0 %v376, 17
      %v384 = vpop.permute.xlu0 %383
      %vm385 = vcmp.lt.s32.totalorder %v253, 17
      %v386 = vsel %vm385, %v378, %v382
      %v387 = vsel %vm385, %v380, %v384
      %v388 = vsel %vm385, %v382, %v378
      %v389 = vsel %vm385, %v384, %v380
      %s390 = scalar_lea.vmem %s2, 6
      %v391 = vld [vmem:[%s390] ss:$8 sm:$0x3]
      %v393 = vlaneseq
      %v394 = vshrl.u32 %v393, 7
      %v395 = vsub.s32 0, %v394
      %v396 = vrot.slane %v391, %v395
      %v397 = vlaneseq
      %v398 = vshrl.u32 %v397, 7
      %v399 = vsub.s32 1, %v398
      %v400 = vrot.slane %v391, %v399
      %v403 = vmul.f32 %v388, %v396
      %v404 = vmul.f32 %v386, %v400
      %v405 = vmul.f32 %v389, %v396
      %v406 = vmul.f32 %v387, %v400
      %v407 = vpack.c.bf16 %v405, %v403
      %v408 = vpack.c.bf16 %v406, %v404
      %409 = vst [vmem:[#allocation2] sm:$0xff] %v407
      %410 = vst [vmem:[#allocation2 + $0x8] sm:$0xff] %v408
      %411 = vrot.lane.b32.xlu0 %v373, 16
      %v412 = vpop.permute.xlu0 %411
      %413 = vrot.lane.b32.xlu0 %v375, 16
      %v414 = vpop.permute.xlu0 %413
      %415 = vrot.lane.b32.xlu0 %v374, 16
      %v416 = vpop.permute.xlu0 %415
      %417 = vrot.lane.b32.xlu0 %v376, 16
      %v418 = vpop.permute.xlu0 %417
      %v419 = vsel %vm316, %v412, %v416
      %v420 = vsel %vm316, %v414, %v418
      %v421 = vsel %vm316, %v416, %v412
      %v422 = vsel %vm316, %v418, %v414
      %s423 = scalar_lea.vmem %s2, 7
      %v424 = vld [vmem:[%s423] ss:$8 sm:$0x3]
      %v426 = vlaneseq
      %v427 = vshrl.u32 %v426, 7
      %v428 = vsub.s32 0, %v427
      %v429 = vrot.slane %v424, %v428
      %v430 = vlaneseq
      %v431 = vshrl.u32 %v430, 7
      %v432 = vsub.s32 1, %v431
      %v433 = vrot.slane %v424, %v432
      %v436 = vmul.f32 %v421, %v429
      %v437 = vmul.f32 %v419, %v433
      %v438 = vmul.f32 %v422, %v429
      %v439 = vmul.f32 %v420, %v433
      %v440 = vpack.c.bf16 %v438, %v436
      %v441 = vpack.c.bf16 %v439, %v437
      %442 = vst [vmem:[#allocation2 + $0x10] sm:$0xff] %v440
      %443 = vst [vmem:[#allocation2 + $0x18] sm:$0xff] %v441
      %444 = vrot.lane.b32.xlu0 %v373, 15
      %v445 = vpop.permute.xlu0 %444
      %446 = vrot.lane.b32.xlu0 %v375, 15
      %v447 = vpop.permute.xlu0 %446
      %448 = vrot.lane.b32.xlu0 %v374, 15
      %v449 = vpop.permute.xlu0 %448
      %450 = vrot.lane.b32.xlu0 %v376, 15
      %v451 = vpop.permute.xlu0 %450
      %vm452 = vcmp.lt.s32.totalorder %v253, 15
      %v453 = vsel %vm452, %v445, %v449
      %v454 = vsel %vm452, %v447, %v451
      %v455 = vsel %vm452, %v449, %v445
      %v456 = vsel %vm452, %v451, %v447
      %s457 = scalar_lea.vmem %s2, 16
      %v458 = vld [vmem:[%s457] ss:$8 sm:$0x3]
      %v460 = vlaneseq
      %v461 = vshrl.u32 %v460, 7
      %v462 = vsub.s32 0, %v461
      %v463 = vrot.slane %v458, %v462
      %v464 = vlaneseq
      %v465 = vshrl.u32 %v464, 7
      %v466 = vsub.s32 1, %v465
      %v467 = vrot.slane %v458, %v466
      %v470 = vmul.f32 %v455, %v463
      %v471 = vmul.f32 %v453, %v467
      %v472 = vmul.f32 %v456, %v463
      %v473 = vmul.f32 %v454, %v467
      %v474 = vpack.c.bf16 %v472, %v470
      %v475 = vpack.c.bf16 %v473, %v471
      %476 = vst [vmem:[#allocation2 + $0x20] sm:$0xff] %v474
      %477 = vst [vmem:[#allocation2 + $0x28] sm:$0xff] %v475
      %478 = vrot.lane.b32.xlu0 %v373, 1
      %v479 = vpop.permute.xlu0 %478
      %480 = vrot.lane.b32.xlu0 %v375, 1
      %v481 = vpop.permute.xlu0 %480
      %482 = vrot.lane.b32.xlu0 %v374, 1
      %v483 = vpop.permute.xlu0 %482
      %484 = vrot.lane.b32.xlu0 %v376, 1
      %v485 = vpop.permute.xlu0 %484
      %v486 = vsel %vm254, %v479, %v483
      %v487 = vsel %vm254, %v481, %v485
      %v488 = vsel %vm254, %v483, %v479
      %v489 = vsel %vm254, %v485, %v481
      %s490 = scalar_lea.vmem %s2, 17
      %v491 = vld [vmem:[%s490] ss:$8 sm:$0x3]
      %v493 = vlaneseq
      %v494 = vshrl.u32 %v493, 7
      %v495 = vsub.s32 0, %v494
      %v496 = vrot.slane %v491, %v495
      %v497 = vlaneseq
      %v498 = vshrl.u32 %v497, 7
      %v499 = vsub.s32 1, %v498
      %v500 = vrot.slane %v491, %v499
      %v503 = vmul.f32 %v488, %v496
      %v504 = vmul.f32 %v486, %v500
      %v505 = vmul.f32 %v489, %v496
      %v506 = vmul.f32 %v487, %v500
      %v507 = vpack.c.bf16 %v505, %v503
      %v508 = vpack.c.bf16 %v506, %v504
      %509 = vst [vmem:[#allocation2 + $0x30] sm:$0xff] %v507
      %510 = vst [vmem:[#allocation2 + $0x38] sm:$0xff] %v508
      %v511 = vpack.c.bf16 %v375, %v373
      %v512 = vpack.c.bf16 %v376, %v374
      %513 = vst [vmem:[#allocation2 + $0x40] sm:$0xff] %v511
      %514 = vst [vmem:[#allocation2 + $0x48] sm:$0xff] %v512
      %515 = vrot.lane.b32.xlu0 %v373, 127
      %v516 = vpop.permute.xlu0 %515
      %517 = vrot.lane.b32.xlu0 %v375, 127
      %v518 = vpop.permute.xlu0 %517
      %519 = vrot.lane.b32.xlu0 %v374, 127
      %v520 = vpop.permute.xlu0 %519
      %521 = vrot.lane.b32.xlu0 %v376, 127
      %v522 = vpop.permute.xlu0 %521
      %v523 = vsel %vm261, %v516, %v520
      %v524 = vsel %vm261, %v518, %v522
      %v525 = vsel %vm261, %v520, %v516
      %v526 = vsel %vm261, %v522, %v518
      %s527 = scalar_lea.vmem %s2, 18
      %v528 = vld [vmem:[%s527] ss:$8 sm:$0x3]
      %v530 = vlaneseq
      %v531 = vshrl.u32 %v530, 7
      %v532 = vsub.s32 0, %v531
      %v533 = vrot.slane %v528, %v532
      %v534 = vlaneseq
      %v535 = vshrl.u32 %v534, 7
      %v536 = vsub.s32 1, %v535
      %v537 = vrot.slane %v528, %v536
      %v540 = vmul.f32 %v523, %v533
      %v541 = vmul.f32 %v525, %v537
      %v542 = vmul.f32 %v524, %v533
      %v543 = vmul.f32 %v526, %v537
      %v544 = vpack.c.bf16 %v542, %v540
      %v545 = vpack.c.bf16 %v543, %v541
      %546 = vst [vmem:[#allocation2 + $0x50] sm:$0xff] %v544
      %547 = vst [vmem:[#allocation2 + $0x58] sm:$0xff] %v545
      %548 = vrot.lane.b32.xlu0 %v373, 113
      %v549 = vpop.permute.xlu0 %548
      %550 = vrot.lane.b32.xlu0 %v375, 113
      %v551 = vpop.permute.xlu0 %550
      %552 = vrot.lane.b32.xlu0 %v374, 113
      %v553 = vpop.permute.xlu0 %552
      %554 = vrot.lane.b32.xlu0 %v376, 113
      %v555 = vpop.permute.xlu0 %554
      %vm556 = vcmp.lt.s32.totalorder %v253, 113
      %v557 = vsel %vm556, %v549, %v553
      %v558 = vsel %vm556, %v551, %v555
      %v559 = vsel %vm556, %v553, %v549
      %v560 = vsel %vm556, %v555, %v551
      %s561 = scalar_lea.vmem %s2, 19
      %v562 = vld [vmem:[%s561] ss:$8 sm:$0x3]
      %v564 = vlaneseq
      %v565 = vshrl.u32 %v564, 7
      %v566 = vsub.s32 0, %v565
      %v567 = vrot.slane %v562, %v566
      %v568 = vlaneseq
      %v569 = vshrl.u32 %v568, 7
      %v570 = vsub.s32 1, %v569
      %v571 = vrot.slane %v562, %v570
      %v574 = vmul.f32 %v557, %v567
      %v575 = vmul.f32 %v559, %v571
      %v576 = vmul.f32 %v558, %v567
      %v577 = vmul.f32 %v560, %v571
      %v578 = vpack.c.bf16 %v576, %v574
      %v579 = vpack.c.bf16 %v577, %v575
      %580 = vst [vmem:[#allocation2 + $0x60] sm:$0xff] %v578
      %581 = vst [vmem:[#allocation2 + $0x68] sm:$0xff] %v579
      %582 = vrot.lane.b32.xlu0 %v373, 112
      %v583 = vpop.permute.xlu0 %582
      %584 = vrot.lane.b32.xlu0 %v375, 112
      %v585 = vpop.permute.xlu0 %584
      %586 = vrot.lane.b32.xlu0 %v374, 112
      %v587 = vpop.permute.xlu0 %586
      %588 = vrot.lane.b32.xlu0 %v376, 112
      %v589 = vpop.permute.xlu0 %588
      %v590 = vsel %vm323, %v583, %v587
      %v591 = vsel %vm323, %v585, %v589
      %v592 = vsel %vm323, %v587, %v583
      %v593 = vsel %vm323, %v589, %v585
      %s594 = scalar_lea.vmem %s2, 20
      %v595 = vld [vmem:[%s594] ss:$8 sm:$0x3]
      %v597 = vlaneseq
      %v598 = vshrl.u32 %v597, 7
      %v599 = vsub.s32 0, %v598
      %v600 = vrot.slane %v595, %v599
      %v601 = vlaneseq
      %v602 = vshrl.u32 %v601, 7
      %v603 = vsub.s32 1, %v602
      %v604 = vrot.slane %v595, %v603
      %v607 = vmul.f32 %v590, %v600
      %v608 = vmul.f32 %v592, %v604
      %v609 = vmul.f32 %v591, %v600
      %v610 = vmul.f32 %v593, %v604
      %v611 = vpack.c.bf16 %v609, %v607
      %v612 = vpack.c.bf16 %v610, %v608
      %613 = vst [vmem:[#allocation2 + $0x70] sm:$0xff] %v611
      %614 = vst [vmem:[#allocation2 + $0x78] sm:$0xff] %v612
      %615 = vrot.lane.b32.xlu0 %v373, 111
      %v616 = vpop.permute.xlu0 %615
      %617 = vrot.lane.b32.xlu0 %v375, 111
      %v618 = vpop.permute.xlu0 %617
      %619 = vrot.lane.b32.xlu0 %v374, 111
      %v620 = vpop.permute.xlu0 %619
      %621 = vrot.lane.b32.xlu0 %v376, 111
      %v622 = vpop.permute.xlu0 %621
      %vm623 = vcmp.lt.s32.totalorder %v253, 111
      %v624 = vsel %vm623, %v616, %v620
      %v625 = vsel %vm623, %v618, %v622
      %v626 = vsel %vm623, %v620, %v616
      %v627 = vsel %vm623, %v622, %v618
      %s628 = scalar_lea.vmem %s2, 21
      %v629 = vld [vmem:[%s628] ss:$8 sm:$0x3]
      %v631 = vlaneseq
      %v632 = vshrl.u32 %v631, 7
      %v633 = vsub.s32 0, %v632
      %v634 = vrot.slane %v629, %v633
      %v635 = vlaneseq
      %v636 = vshrl.u32 %v635, 7
      %v637 = vsub.s32 1, %v636
      %v638 = vrot.slane %v629, %v637
      %v641 = vmul.f32 %v624, %v634
      %v642 = vmul.f32 %v626, %v638
      %v643 = vmul.f32 %v625, %v634
      %v644 = vmul.f32 %v627, %v638
      %v645 = vpack.c.bf16 %v643, %v641
      %v646 = vpack.c.bf16 %v644, %v642
      %647 = vst [vmem:[#allocation2 + $0x80] sm:$0xff] %v645
      %648 = vst [vmem:[#allocation2 + $0x88] sm:$0xff] %v646
      %v649 = vld [vmem:[%s3] sm:$0xff]
      %v650 = vld [vmem:[#allocation2] sm:$0xff]
      %v651 = vld [vmem:[#allocation2 + $0x8] sm:$0xff]
      %v652 = vld [vmem:[#allocation2 + $0x10] sm:$0xff]
      %v653 = vld [vmem:[#allocation2 + $0x18] sm:$0xff]
      %v654 = vld [vmem:[#allocation2 + $0x20] sm:$0xff]
      %v655 = vld [vmem:[#allocation2 + $0x28] sm:$0xff]
      %v656 = vld [vmem:[#allocation2 + $0x30] sm:$0xff]
      %v657 = vld [vmem:[#allocation2 + $0x38] sm:$0xff]
      %v658 = vld [vmem:[#allocation2 + $0x40] sm:$0xff]
      %v659 = vld [vmem:[#allocation2 + $0x48] sm:$0xff]
      %v660 = vld [vmem:[#allocation2 + $0x50] sm:$0xff]
      %v661 = vld [vmem:[#allocation2 + $0x58] sm:$0xff]
      %v662 = vld [vmem:[#allocation2 + $0x60] sm:$0xff]
      %v663 = vld [vmem:[#allocation2 + $0x68] sm:$0xff]
      %v664 = vld [vmem:[#allocation2 + $0x70] sm:$0xff]
      %v665 = vld [vmem:[#allocation2 + $0x78] sm:$0xff]
      %v666 = vld [vmem:[#allocation2 + $0x80] sm:$0xff]
      %v667 = vld [vmem:[#allocation2 + $0x88] sm:$0xff]
      %v668 = vld [vmem:[%s4] sm:$0xff]
      %670 = vset.pattern.permute.xlu0 0
      %671 = vperm.xlu0 %670, %v668
      %v672 = vpop.permute.xlu0 %671
      %v675 = vunpack.c.l.b16 %v649
      %v676 = vunpack.c.h.b16 %v649
      %v677 = vpack.c.b16 %v675, %v675
      %v678 = vpack.c.b16 %v676, %v676
      %vm680 = vcmask 130048
      %v682 = vsel %vm680, %v678, 0
      %684 = vmatprep.subr.bf16.mxu0 %v651
      %685 = vmatpush1.bf16.msra.mxu0 %v650
      %686 = vmatprep.subr.bf16.mxu0 %v653
      %687 = vmatpush1.bf16.msra.mxu0 %v652
      %688 = vmatprep.subr.bf16.mxu0 %v655
      %689 = vmatpush1.bf16.msra.mxu0 %v654
      %690 = vmatprep.subr.bf16.mxu0 %v657
      %691 = vmatpush1.bf16.msra.mxu0 %v656
      %692 = vmatprep.subr.bf16.mxu0 %v659
      %693 = vmatpush1.bf16.msra.mxu0 %v658
      %694 = vmatprep.subr.bf16.mxu0 %v661
      %695 = vmatpush1.bf16.msra.mxu0 %v660
      %696 = vmatprep.subr.bf16.mxu0 %v663
      %697 = vmatpush1.bf16.msra.mxu0 %v662
      %698 = vmatprep.subr.bf16.mxu0 %v665
      %699 = vmatpush1.bf16.msra.mxu0 %v664
      %700 = vmatprep.subr.bf16.mxu0 %v667
      %701 = vmatpush1.bf16.msra.mxu0 %v666
      %702 = vmatprep.subr.bf16.mxu0 0
      %703 = vmatpush1.bf16.msra.mxu0 0
      %704 = vmatprep.subr.bf16.mxu0 0
      %705 = vmatpush1.bf16.msra.mxu0 0
      %706 = vmatprep.subr.bf16.mxu0 0
      %707 = vmatpush1.bf16.msra.mxu0 0
      %708 = vmatprep.subr.bf16.mxu0 0
      %709 = vmatpush1.bf16.msra.mxu0 0
      %710 = vmatprep.subr.bf16.mxu0 0
      %711 = vmatpush1.bf16.msra.mxu0 0
      %712 = vmatprep.subr.bf16.mxu0 0
      %713 = vmatpush1.bf16.msra.mxu0 0
      %714 = vmatprep.subr.bf16.mxu0 0
      %715 = vmatpush1.bf16.msra.mxu0 0
      %716 = vmatprep.mubr.bf16.mxu0 %v682
      %717 = vmatmul.mubr.bf16.gmra.mrb[0].mxu0 %v677
      %v718 = vpop.f32.mrb[0].mxu0
      %v719 = vadd.f32 %v672, %v718
      %v720 = vpop.f32.mrb[0].mxu0
      %v721 = vadd.f32 %v672, %v720
      %v722 = vpop.f32.mrb[0].mxu0
      %v723 = vpop.f32.mrb[0].mxu0
      %724 = vdwg.mxu0
      %v725 = vmul.f32 %v719, 0.1
      %v726 = vmul.f32 %v721, 0.1
      %v727 = vmax.f32 %v719, %v725
      %v728 = vmax.f32 %v721, %v726
      %729 = vst [vmem:[%s244] sm:$0xff] %v727
      %730 = vst [vmem:[%s244 + $0x8] sm:$0xff] %v728
      %p731 = scmp.lt.s32.totalorder %s16, 1
      %s732 = scalar_select %p731, %s16, 1
      %s733 = smul.addr %s732, 2
      %s734 = smul.addr %s733, 8
      %s735 = scalar_lea.vmem %s5, %s734
      // Predicated region
      $region41: #{up_light_forward.1} parent=39 // pred_check
        %p736 = pneg %p149
      $region42: #{up_light_forward.1} parent=39 // pred_check_branch
        %738 = sbr.rel (%p736) target = $region44
      $region43: #{up_light_forward.1} parent=39 // pred_region
        _
      $region44: #{up_light_forward.1} parent=39 // pred_fallthru
        _
    $region40: #{up_light_forward.1} parent=5 // pred_fallthru
      _
    %p739 = scmp.le.s32.totalorder 2, %s11
    // Predicated region
    $region45: #{up_light_forward.1} parent=5 // pred_check
      %p740 = pneg %p739
    $region46: #{up_light_forward.1} parent=5 // pred_check_branch
      %742 = sbr.rel (%p740) target = $region48
    $region47: #{up_light_forward.1} parent=5 // pred_region
      %s743 = ssub.s32 %s11, 2
      // Predicated region
      $region49: #{up_light_forward.1} parent=47 // pred_check
        %p744 = pneg %p155
      $region50: #{up_light_forward.1} parent=47 // pred_check_branch
        %746 = sbr.rel (%p744) target = $region52
      $region51: #{up_light_forward.1} parent=47 // pred_region
        %p747 = scmp.lt.s32.totalorder %s17, 1
        %s748 = scalar_select %p747, %s17, 1
        %s749 = smul.addr %s748, 2
        %s750 = smul.addr %s749, 8
        %s751 = scalar_lea.vmem %s5, %s750
      $region52: #{up_light_forward.1} parent=47 // pred_fallthru
        _
    $region48: #{up_light_forward.1} parent=5 // pred_fallthru
      _
  $region6: #{up_light_forward.1} parent=0 // loop_footer
    %s15 = sadd.s32 1, %s11
  $region7: #{up_light_forward.1} parent=0 // loop_footer_branch
    %10 = sbr.rel target = $region3
  $region8: #{up_light_forward.1} parent=0 // loop_exit
    _

</llo_original>
